<compile_context>
chip_gen: v5e
topology: v5e:2x2
jax: 0.10.0
libtpu: 0.0.40
codegen_flags: <defaults>
</compile_context>

<pallas_src>
import functools

import jax
import jax.numpy as jnp
from jax.experimental import pallas as pl
from jax.experimental.pallas import tpu as pltpu

REPARAM_OFFSET = 2.0 ** -18
PEDESTAL = REPARAM_OFFSET ** 2


# ----------------------------------------------------------------------------
# NonNegativeParametrizer (parameter glue, plain JAX)
# ----------------------------------------------------------------------------
def nonneg_init(x):
    # stored parameter = sqrt(max(x + pedestal, pedestal))
    return jnp.sqrt(jnp.maximum(x + PEDESTAL, PEDESTAL))


def nonneg_forward(x, minimum=0.0):
    # LowerBound(bound) followed by square - pedestal
    bound = (float(minimum) + PEDESTAL) ** 0.5
    out = jnp.maximum(x, bound)
    return out * out - PEDESTAL


# ----------------------------------------------------------------------------
# Pallas kernel: fused square / channel mix / bias / (r)sqrt / scale
#   x_ref     : (C, t)  channels on sublanes, spatial (H*W tile) on lanes
#   gamma_ref : (C, C)  gamma[o, i]           (bf16 when mxu_bf16 else f32)
#   beta_ref  : (C, 1)
# ----------------------------------------------------------------------------
def _gdn_kernel(x_ref, gamma_ref, beta_ref, o_ref, *, inverse, use_mxu):
    x = x_ref[...].astype(jnp.float32)            # (C, t)
    xsq = x * x
    beta = beta_ref[...].astype(jnp.float32)      # (C, 1)

    if use_mxu:
        # norm[o, h] = beta[o] + sum_i gamma[o, i] * x[i, h]^2   (MXU matmul,
        # f32 accumulation; gamma dtype decides bf16 vs f32 MXU path).
        xs = xsq.astype(gamma_ref.dtype)
        norm = jnp.dot(gamma_ref[...], xs,
                       preferred_element_type=jnp.float32) + beta
    else:
        # Small-C fast path: VPU broadcast multiply-adds (no MXU pass).
        g = gamma_ref[...]                        # (C, C) f32
        c = x.shape[0]
        norm = g[:, 0:1] * xsq[0:1, :]            # (C,1)*(1,t) -> (C,t)
        for i in range(1, c):
            norm = norm + g[:, i:i + 1] * xsq[i:i + 1, :]
        norm = norm + beta

    scale = jnp.sqrt(norm) if inverse else jax.lax.rsqrt(norm)
    o_ref[...] = (x * scale).astype(o_ref.dtype)


def gdn_pallas(x_nchw, gamma_param, beta_param, *, inverse=False, beta_min=1e-6,
               tile_bytes=4 << 20, small_c_threshold=32,
               bf16_matmul_threshold=192):
    """x_nchw: (N, C, H, W). gamma_param: (C, C). beta_param: (C,)."""
    N, C, H, W = x_nchw.shape
    HW = H * W

    # Reparametrize (cheap parameter glue, plain JAX).
    beta = nonneg_forward(beta_param, minimum=beta_min).reshape(C, 1)
    beta = beta.astype(jnp.float32)
    gamma = nonneg_forward(gamma_param).astype(jnp.float32)     # (C, C)

    use_mxu = C > small_c_threshold
    mxu_bf16 = use_mxu and C >= bf16_matmul_threshold
    if mxu_bf16:
        # bf16 matmul inputs, f32 accumulation (beta added in f32 in-kernel).
        gamma = gamma.astype(jnp.bfloat16)

    # Keep NCHW; (N, C, H, W) -> (N, C, H*W) is a free reshape (no transpose).
    x3d = x_nchw.reshape(N, C, HW)
    itemsize = x3d.dtype.itemsize

    # Lane-tile sizing: aim for ~tile_bytes per input tile (big DMAs, few grid
    # steps), rounded to a multiple of 128 lanes; take the whole row when it
    # fits.  Double-buffered in+out tiles then stay well inside scoped VMEM on
    # v5e/v6e/v7x.
    t_budget = max(128, (tile_bytes // (C * itemsize)) // 128 * 128)
    t = HW if HW <= t_budget else t_budget

    grid = (N, pl.cdiv(HW, t))                           # no divisibility assert

    tile_b = C * t * itemsize
    vmem_limit = int(4 * tile_b                          # in+out, 2 buffers each
                     + gamma.size * gamma.dtype.itemsize
                     + beta.size * 4
                     + (2 << 20))                        # headroom
    vmem_limit = max(vmem_limit, 16 << 20)

    out3d = pl.pallas_call(
        functools.partial(_gdn_kernel, inverse=inverse, use_mxu=use_mxu),
        out_shape=jax.ShapeDtypeStruct((N, C, HW), x3d.dtype),
        grid_spec=pltpu.PrefetchScalarGridSpec(
            num_scalar_prefetch=0,
            grid=grid,
            in_specs=[
                pl.BlockSpec((None, C, t), lambda n, j: (n, 0, j)),   # x tile
                pl.BlockSpec((C, C), lambda n, j: (0, 0)),            # gamma
                pl.BlockSpec((C, 1), lambda n, j: (0, 0)),            # beta
            ],
            out_specs=pl.BlockSpec((None, C, t), lambda n, j: (n, 0, j)),
        ),
        compiler_params=pltpu.CompilerParams(
            dimension_semantics=("parallel", "parallel"),
            vmem_limit_bytes=vmem_limit),
        cost_estimate=pl.CostEstimate(
            flops=2 * N * HW * C * C,
            transcendentals=N * C * HW,
            bytes_accessed=2 * N * C * HW * itemsize
                           + int(gamma.size) * gamma.dtype.itemsize
                           + C * 4),
    )(x3d, gamma, beta)

    return out3d.reshape(N, C, H, W)


# ----------------------------------------------------------------------------
# Plain-JAX reference for verification
# ----------------------------------------------------------------------------
def gdn_reference(x_nchw, gamma_param, beta_param, *, inverse=False,
                  beta_min=1e-6):
    N, C, H, W = x_nchw.shape
    beta = nonneg_forward(beta_param, minimum=beta_min)
    gamma = nonneg_forward(gamma_param)
    xsq = x_nchw.astype(jnp.float32) ** 2
    norm = jnp.einsum('oi,nihw->nohw', gamma, xsq) + beta.reshape(1, C, 1, 1)
    norm = jnp.sqrt(norm) if inverse else jax.lax.rsqrt(norm)
    return (x_nchw * norm).astype(x_nchw.dtype)


if __name__ == "__main__":
    key = jax.random.PRNGKey(0)
    k1, k2, k3 = jax.random.split(key, 3)

    # ---- small-C config (mirrors GDN.__init__ defaults): VPU channel-mix path
    C = 4
    beta_p = nonneg_init(jnp.ones((C,), jnp.float32))
    gamma_p = nonneg_init(0.1 * jnp.eye(C, dtype=jnp.float32))
    x = jax.random.normal(k1, (2, C, 16, 16), dtype=jnp.float32)

    out = jax.block_until_ready(gdn_pallas(x, gamma_p, beta_p, inverse=False))
    ref = gdn_reference(x, gamma_p, beta_p, inverse=False)
    assert out.shape == x.shape and out.dtype == x.dtype
    assert jnp.allclose(out, ref, atol=1e-5, rtol=1e-5), "GDN mismatch vs reference"

    out_inv = jax.block_until_ready(gdn_pallas(x, gamma_p, beta_p, inverse=True))
    ref_inv = gdn_reference(x, gamma_p, beta_p, inverse=True)
    assert jnp.allclose(out_inv, ref_inv, atol=1e-5, rtol=1e-5), "IGDN mismatch"

    # ---- large-C config: exercises the MXU bf16 channel-mix path
    C2 = 256
    beta_p2 = nonneg_init(jnp.ones((C2,), jnp.float32))
    gamma_p2 = nonneg_init(0.1 * jnp.eye(C2, dtype=jnp.float32)
                           + 0.01 * jax.random.uniform(k2, (C2, C2), jnp.float32))
    x2 = jax.random.normal(k3, (1, C2, 16, 16), dtype=jnp.float32)

    out2 = jax.block_until_ready(gdn_pallas(x2, gamma_p2, beta_p2, inverse=False))
    ref2 = gdn_reference(x2, gamma_p2, beta_p2, inverse=False)
    assert jnp.allclose(out2, ref2, atol=2e-2, rtol=2e-2), "large-C GDN mismatch"

    print("KERNEL_OK")
</pallas_src>

<mosaic_0001>
module attributes {stable_mosaic.version = 11 : i64} {
  func.func @_gdn_kernel(%arg0: i32, %arg1: i32, %arg2: memref<1x4x256xf32, #tpu.memory_space<vmem>>, %arg3: memref<4x4xf32, #tpu.memory_space<vmem>>, %arg4: memref<4x1xf32, #tpu.memory_space<vmem>>, %arg5: memref<1x4x256xf32, #tpu.memory_space<vmem>>) attributes {dimension_semantics = [#tpu.dimension_semantics<parallel>, #tpu.dimension_semantics<parallel>], iteration_bounds = array<i64: 2, 1>, scalar_prefetch = 0 : i64, scratch_operands = 0 : i64, tpu.core_type = #tpu.core_type<tc>, window_params = [{transform_indices = @transform_0, window_bounds = array<i64: 1, 4, 256>}, {pipeline_mode = #tpu.pipeline_mode<synchronous>, transform_indices = @transform_1, window_bounds = array<i64: 4, 4>}, {pipeline_mode = #tpu.pipeline_mode<synchronous>, transform_indices = @transform_2, window_bounds = array<i64: 4, 1>}, {transform_indices = @transform_3, window_bounds = array<i64: 1, 4, 256>}]} {
    %c0 = arith.constant 0 : index
    %c0_0 = arith.constant 0 : index
    %c0_1 = arith.constant 0 : index
    %0 = vector.load %arg2[%c0, %c0_0, %c0_1] : memref<1x4x256xf32, #tpu.memory_space<vmem>>, vector<1x4x256xf32>
    %1 = vector.shape_cast %0 : vector<1x4x256xf32> to vector<4x256xf32>
    %2 = arith.mulf %1, %1 : vector<4x256xf32>
    %c0_2 = arith.constant 0 : index
    %c0_3 = arith.constant 0 : index
    %3 = vector.load %arg4[%c0_2, %c0_3] : memref<4x1xf32, #tpu.memory_space<vmem>>, vector<4x1xf32>
    %c0_4 = arith.constant 0 : index
    %c0_5 = arith.constant 0 : index
    %4 = vector.load %arg3[%c0_4, %c0_5] : memref<4x4xf32, #tpu.memory_space<vmem>>, vector<4x4xf32>
    %5 = vector.extract_strided_slice %4 {offsets = [0, 0], sizes = [4, 1], strides = [1, 1]} : vector<4x4xf32> to vector<4x1xf32>
    %6 = vector.extract_strided_slice %2 {offsets = [0, 0], sizes = [1, 256], strides = [1, 1]} : vector<4x256xf32> to vector<1x256xf32>
    %7 = vector.broadcast %5 : vector<4x1xf32> to vector<4x256xf32>
    %8 = vector.broadcast %6 : vector<1x256xf32> to vector<4x256xf32>
    %9 = arith.mulf %7, %8 : vector<4x256xf32>
    %10 = vector.extract_strided_slice %4 {offsets = [0, 1], sizes = [4, 1], strides = [1, 1]} : vector<4x4xf32> to vector<4x1xf32>
    %11 = vector.extract_strided_slice %2 {offsets = [1, 0], sizes = [1, 256], strides = [1, 1]} : vector<4x256xf32> to vector<1x256xf32>
    %12 = vector.broadcast %10 : vector<4x1xf32> to vector<4x256xf32>
    %13 = vector.broadcast %11 : vector<1x256xf32> to vector<4x256xf32>
    %14 = arith.mulf %12, %13 : vector<4x256xf32>
    %15 = arith.addf %9, %14 : vector<4x256xf32>
    %16 = vector.extract_strided_slice %4 {offsets = [0, 2], sizes = [4, 1], strides = [1, 1]} : vector<4x4xf32> to vector<4x1xf32>
    %17 = vector.extract_strided_slice %2 {offsets = [2, 0], sizes = [1, 256], strides = [1, 1]} : vector<4x256xf32> to vector<1x256xf32>
    %18 = vector.broadcast %16 : vector<4x1xf32> to vector<4x256xf32>
    %19 = vector.broadcast %17 : vector<1x256xf32> to vector<4x256xf32>
    %20 = arith.mulf %18, %19 : vector<4x256xf32>
    %21 = arith.addf %15, %20 : vector<4x256xf32>
    %22 = vector.extract_strided_slice %4 {offsets = [0, 3], sizes = [4, 1], strides = [1, 1]} : vector<4x4xf32> to vector<4x1xf32>
    %23 = vector.extract_strided_slice %2 {offsets = [3, 0], sizes = [1, 256], strides = [1, 1]} : vector<4x256xf32> to vector<1x256xf32>
    %24 = vector.broadcast %22 : vector<4x1xf32> to vector<4x256xf32>
    %25 = vector.broadcast %23 : vector<1x256xf32> to vector<4x256xf32>
    %26 = arith.mulf %24, %25 : vector<4x256xf32>
    %27 = arith.addf %21, %26 : vector<4x256xf32>
    %28 = vector.broadcast %3 : vector<4x1xf32> to vector<4x256xf32>
    %29 = arith.addf %27, %28 : vector<4x256xf32>
    %30 = math.rsqrt %29 : vector<4x256xf32>
    %31 = arith.mulf %1, %30 : vector<4x256xf32>
    %c0_6 = arith.constant 0 : index
    %c0_7 = arith.constant 0 : index
    %c0_8 = arith.constant 0 : index
    %32 = vector.load %arg5[%c0_6, %c0_7, %c0_8] : memref<1x4x256xf32, #tpu.memory_space<vmem>>, vector<1x4x256xf32>
    %33 = vector.shape_cast %32 : vector<1x4x256xf32> to vector<4x256xf32>
    %34 = vector.shape_cast %31 : vector<4x256xf32> to vector<1x4x256xf32>
    tpu.vector_store %arg5[%c0_6, %c0_7, %c0_8], %34 {strides = array<i32>} : memref<1x4x256xf32, #tpu.memory_space<vmem>>, vector<1x4x256xf32>,
    return
  }
  func.func @transform_0(%arg0: i32, %arg1: i32) -> (i32, i32, i32) {
    %c0_i32 = arith.constant 0 : i32
    %c0_i32_0 = arith.constant 0 : i32
    return %arg0, %c0_i32, %arg1 : i32, i32, i32
  }
  func.func @transform_1(%arg0: i32, %arg1: i32) -> (i32, i32) {
    %c0_i32 = arith.constant 0 : i32
    %c0_i32_0 = arith.constant 0 : i32
    %c0_i32_1 = arith.constant 0 : i32
    return %c0_i32, %c0_i32_0 : i32, i32
  }
  func.func @transform_2(%arg0: i32, %arg1: i32) -> (i32, i32) {
    %c0_i32 = arith.constant 0 : i32
    %c0_i32_0 = arith.constant 0 : i32
    %c0_i32_1 = arith.constant 0 : i32
    return %c0_i32, %c0_i32_0 : i32, i32
  }
  func.func @transform_3(%arg0: i32, %arg1: i32) -> (i32, i32, i32) {
    %c0_i32 = arith.constant 0 : i32
    %c0_i32_0 = arith.constant 0 : i32
    return %arg0, %c0_i32, %arg1 : i32, i32, i32
  }
}

</mosaic_0001>

<llo_original>
// kernel: tpu_custom_call.1
$region0: #{tpu_custom_call.1}
  #allocation0 [shape = 'u32[]', space=smem, size = 0x4, offset = 0x4, fixed_abs, tag = 'smem constant byte address 0x4 - core index']
  #allocation1 [shape = 'u32[72,128]{1,0:T(1,128)}', space=vmem, size = 0x9000, scoped, tag = 'internal scratch']
  %s0 = inlined_call_operand.hbm [shape: f32[2,4,256], index: 0, kind: input, shape index: {}]
  %s1 = inlined_call_operand.vmem [shape: f32[4,4], index: 1, kind: input, shape index: {}]
  %s2 = inlined_call_operand.vmem [shape: f32[4,1], index: 2, kind: input, shape index: {}]
  %s3 = inlined_call_operand.hbm [shape: f32[2,4,256], index: 3, kind: output, shape index: {}]
  %s4 = sld [smem:[#allocation0]]
  $region49: #{tpu_custom_call.1} parent=0
    _
  %s6 = ssub.s32 1, %s4
  %s7 = scalar_select 0, %s6, %s4
  $region1: #{tpu_custom_call.1} parent=0
    #allocation2 [shape = 'u8[8192]{0}', space=vmem, size = 0x2000, scoped, tag = 'input window, operand 0']
    #allocation3 [shape = 's32[2]{0}', space=sflag, size = 0x8, scoped, tag = 'scoped memory for tpu_custom_call.1']
    #allocation4 [shape = 's32[2]{0}', space=sflag, size = 0x8, scoped, tag = 'scoped memory for tpu_custom_call.1']
    #allocation5 [shape = 'u8[8192]{0}', space=vmem, size = 0x2000, scoped, tag = 'output window, operand 0']
    %8 = vsyncpa [#allocation3], 0
    %s9 = scalar_lea.sflag [#allocation3], 1
    %10 = vsyncpa %s9, 0
    %11 = vsyncpa [#allocation4], 0
    %s12 = scalar_lea.sflag [#allocation4], 1
    %13 = vsyncpa %s12, 0
    loop: start=0, step=1, limit=4
    $region2: #{tpu_custom_call.1} parent=1 // loop_pre_header
      _
    $region3: #{tpu_custom_call.1} parent=1 // loop_header
      %s15 = sphi 0, %s19
      %p16 = scmp.ge.s32.totalorder %s15, 4
      %s22 = sphi 0, %s34
      %s23 = sphi 0, %s30
      %s24 = sphi 0, %s22
      %s25 = sphi 0, %s23
      %s26 = sphi 0, %s24
      %s27 = sphi 0, %s25
      %s39 = sphi 0, %s41
      %s42 = sphi 0, %s39
      %s43 = sphi 0, %s42
      %s59 = sphi 0, %s43
      %s63 = sphi 0, %s63
      %s65 = sphi 0, %s63
      %s66 = sphi 0, %s65
      %s80 = sphi 0, %s66
      %s84 = sphi 0, %s84
      %s86 = sphi 0, %s84
      %s87 = sphi 0, %s86
      %s101 = sphi 0, %s87
      %s109 = sphi 0, %s111
      %s112 = sphi 0, %s109
      %s113 = sphi 0, %s112
      %s129 = sphi 0, %s113
    $region4: #{tpu_custom_call.1} parent=1 // loop_header_branch
      %18 = sbr.rel (%p16) target = $region8
    $region5: #{tpu_custom_call.1} parent=1 // loop_body
      %s20 = ssub.s32 %s15, 1
      %s21 = ssub.s32 %s15, 2
      %s28 = sadd.s32 1, %s23
      %p29 = scmp.ge.s32.totalorder %s28, 1
      %s30 = scalar_select %p29, 0, %s28
      %s31 = sadd.s32 1, %s22
      %s32 = scalar_select %p29, %s31, %s22
      %p33 = scmp.ge.s32.totalorder %s32, 2
      %s34 = scalar_select %p33, 0, %s32
      %s35 = ssub.s32 %s22, %s34
      %s36 = ssub.s32 %s23, %s30
      %s37 = sor.u32 %s35, %s36
      %p38 = scmp.eq.s32.totalorder %s37, 0
      %s40 = sadd.s32 %s39, 1
      %s41 = scalar_select %p38, %s39, %s40
      %p44 = pneg %p38
      %p45 = scmp.eq.s32.totalorder %s15, 1
      %p46 = por %p44, %p45
      %p47 = scmp.ne.s32.totalorder %s39, %s42
      %p48 = scmp.eq.s32.totalorder %s15, 0
      %p49 = por %p47, %p48
      %p50 = scmp.ne.s32.totalorder %s39, %s42
      %p51 = scmp.eq.s32.totalorder %s20, 1
      %p52 = por %p50, %p51
      %p53 = scmp.ne.s32.totalorder %s42, %s43
      %p54 = scmp.eq.s32.totalorder %s20, 0
      %p55 = por %p53, %p54
      %p56 = scmp.ne.s32.totalorder %s42, %s43
      %p57 = scmp.eq.s32.totalorder %s21, 1
      %p58 = por %p56, %p57
      %p60 = scmp.ne.s32.totalorder %s43, %s59
      %p61 = scmp.eq.s32.totalorder %s21, 0
      %p62 = por %p60, %p61
      %s64 = sadd.s32 %s63, 1
      %p67 = scmp.eq.s32.totalorder %s15, 1
      %p68 = scmp.ne.s32.totalorder %s63, %s65
      %p69 = scmp.eq.s32.totalorder %s15, 0
      %p70 = por %p68, %p69
      %p71 = scmp.ne.s32.totalorder %s63, %s65
      %p72 = scmp.eq.s32.totalorder %s20, 1
      %p73 = por %p71, %p72
      %p74 = scmp.ne.s32.totalorder %s65, %s66
      %p75 = scmp.eq.s32.totalorder %s20, 0
      %p76 = por %p74, %p75
      %p77 = scmp.ne.s32.totalorder %s65, %s66
      %p78 = scmp.eq.s32.totalorder %s21, 1
      %p79 = por %p77, %p78
      %p81 = scmp.ne.s32.totalorder %s66, %s80
      %p82 = scmp.eq.s32.totalorder %s21, 0
      %p83 = por %p81, %p82
      %s85 = sadd.s32 %s84, 1
      %p88 = scmp.eq.s32.totalorder %s15, 1
      %p89 = scmp.ne.s32.totalorder %s84, %s86
      %p90 = scmp.eq.s32.totalorder %s15, 0
      %p91 = por %p89, %p90
      %p92 = scmp.ne.s32.totalorder %s84, %s86
      %p93 = scmp.eq.s32.totalorder %s20, 1
      %p94 = por %p92, %p93
      %p95 = scmp.ne.s32.totalorder %s86, %s87
      %p96 = scmp.eq.s32.totalorder %s20, 0
      %p97 = por %p95, %p96
      %p98 = scmp.ne.s32.totalorder %s86, %s87
      %p99 = scmp.eq.s32.totalorder %s21, 1
      %p100 = por %p98, %p99
      %p102 = scmp.ne.s32.totalorder %s87, %s101
      %p103 = scmp.eq.s32.totalorder %s21, 0
      %p104 = por %p102, %p103
      %s105 = ssub.s32 %s22, %s34
      %s106 = ssub.s32 %s23, %s30
      %s107 = sor.u32 %s105, %s106
      %p108 = scmp.eq.s32.totalorder %s107, 0
      %s110 = sadd.s32 %s109, 1
      %s111 = scalar_select %p108, %s109, %s110
      %p114 = pneg %p108
      %p115 = scmp.eq.s32.totalorder %s15, 1
      %p116 = por %p114, %p115
      %p117 = scmp.ne.s32.totalorder %s109, %s112
      %p118 = scmp.eq.s32.totalorder %s15, 0
      %p119 = por %p117, %p118
      %p120 = scmp.ne.s32.totalorder %s109, %s112
      %p121 = scmp.eq.s32.totalorder %s20, 1
      %p122 = por %p120, %p121
      %p123 = scmp.ne.s32.totalorder %s112, %s113
      %p124 = scmp.eq.s32.totalorder %s20, 0
      %p125 = por %p123, %p124
      %p126 = scmp.ne.s32.totalorder %s112, %s113
      %p127 = scmp.eq.s32.totalorder %s21, 1
      %p128 = por %p126, %p127
      %p130 = scmp.ne.s32.totalorder %s113, %s129
      %p131 = scmp.eq.s32.totalorder %s21, 0
      %p132 = por %p130, %p131
      %p133 = scmp.le.s32.totalorder 1, %s15
      %p134 = scmp.lt.s32.totalorder %s15, 3
      %p135 = pnand %p133, %p134
      %p136 = pneg %p135
      // Predicated region
      $region9: #{tpu_custom_call.1} parent=5 // pred_check
        _
      $region10: #{tpu_custom_call.1} parent=5 // pred_check_branch
        %138 = sbr.rel (%p135) target = $region12
      $region11: #{tpu_custom_call.1} parent=5 // pred_region
        %s139 = ssub.s32 %s15, 1
        // Predicated region
        $region13: #{tpu_custom_call.1} parent=11 // pred_check
          %p140 = pneg %p76
        $region14: #{tpu_custom_call.1} parent=11 // pred_check_branch
          %142 = sbr.rel (%p140) target = $region16
        $region15: #{tpu_custom_call.1} parent=11 // pred_region
          _
        $region16: #{tpu_custom_call.1} parent=11 // pred_fallthru
          _
        // Predicated region
        $region17: #{tpu_custom_call.1} parent=11 // pred_check
          %p143 = pneg %p97
        $region18: #{tpu_custom_call.1} parent=11 // pred_check_branch
          %145 = sbr.rel (%p143) target = $region20
        $region19: #{tpu_custom_call.1} parent=11 // pred_region
          _
        $region20: #{tpu_custom_call.1} parent=11 // pred_fallthru
          _
      $region12: #{tpu_custom_call.1} parent=5 // pred_fallthru
        _
      %p146 = scmp.lt.s32.totalorder %s15, 2
      // Predicated region
      $region21: #{tpu_custom_call.1} parent=5 // pred_check
        %p147 = pneg %p146
      $region22: #{tpu_custom_call.1} parent=5 // pred_check_branch
        %149 = sbr.rel (%p147) target = $region24
      $region23: #{tpu_custom_call.1} parent=5 // pred_region
        // Predicated region
        $region25: #{tpu_custom_call.1} parent=23 // pred_check
          %p150 = pneg %p49
        $region26: #{tpu_custom_call.1} parent=23 // pred_check_branch
          %152 = sbr.rel (%p150) target = $region28
        $region27: #{tpu_custom_call.1} parent=23 // pred_region
          %s153 = sand.u32 %s39, 1
          %s154 = scalar_lea.sflag [#allocation3], %s153
          %s155 = sand.u32 %s39, 1
          %s156 = smul.addr %s155, 8
          %s157 = scalar_lea.vmem [#allocation2], %s156
          %s158 = smul.u32 2, %s23
          %160 = vsyncadd %s154, 0
          %s161 = smul.addr %s22, 2
          %s162 = sadd.s32 %s158, %s161
          %s163 = smul.addr %s162, 4
          %s164 = scalar_lea.hbm %s0, %s163
          %s166 = sshll.u32 %s164, 4
          %s167 = int_to_ptr.hbm [resolvable:$true] %s166
          %s168 = sshll.u32 %s157, 4
          %s169 = int_to_ptr.vmem [resolvable:$true] %s168
          %171 = dma.hbm_to_vmem [thread:$0]  %s167, 128, %s169, %s154
        $region28: #{tpu_custom_call.1} parent=23 // pred_fallthru
          _
      $region24: #{tpu_custom_call.1} parent=5 // pred_fallthru
        _
      %p172 = scmp.le.s32.totalorder 1, %s15
      %p173 = scmp.lt.s32.totalorder %s15, 3
      %p174 = pnand %p172, %p173
      %p175 = pneg %p174
      // Predicated region
      $region29: #{tpu_custom_call.1} parent=5 // pred_check
        _
      $region30: #{tpu_custom_call.1} parent=5 // pred_check_branch
        %177 = sbr.rel (%p174) target = $region32
      $region31: #{tpu_custom_call.1} parent=5 // pred_region
        %s178 = ssub.s32 %s15, 1
        %s179 = sand.u32 %s42, 1
        %s180 = scalar_lea.sflag [#allocation3], %s179
        %s181 = sand.u32 %s42, 1
        %s182 = smul.addr %s181, 8
        %s183 = scalar_lea.vmem [#allocation2], %s182
        // Predicated region
        $region33: #{tpu_custom_call.1} parent=31 // pred_check
          %p184 = pneg %p55
        $region34: #{tpu_custom_call.1} parent=31 // pred_check_branch
          %186 = sbr.rel (%p184) target = $region36
        $region35: #{tpu_custom_call.1} parent=31 // pred_region
          %188 = dma.done %s180, 128
        $region36: #{tpu_custom_call.1} parent=31 // pred_fallthru
          _
        %s189 = sand.u32 %s42, 1
        %s190 = scalar_lea.sflag [#allocation3], %s189
        %s191 = sand.u32 %s42, 1
        %s192 = smul.addr %s191, 8
        %s193 = scalar_lea.vmem [#allocation2], %s192
        %p194 = pneg %p55
        %p195 = pneg %p52
        %p196 = pneg %p76
        %p197 = pneg %p73
        %p198 = pneg %p97
        %p199 = pneg %p94
        %p200 = pneg %p125
        %p201 = pneg %p122
        %s202 = sand.u32 %s112, 1
        %s203 = scalar_lea.sflag [#allocation4], %s202
        %s204 = sand.u32 %s112, 1
        %s205 = smul.addr %s204, 8
        %s206 = scalar_lea.vmem [#allocation5], %s205
        %s207 = smul.u32 2, %s25
        %s208 = smul.u32 2, %s25
        %v209 = vld [vmem:[%s183] sm:$0xff]
        %v210 = vmul.f32 %v209, %v209
        %v211 = vld [vmem:[%s2] sm:$0xf]
        %v212 = vld [vmem:[%s1] sm:$0xf]
        %214 = vset.pattern.permute.xlu0 0
        %215 = vperm.xlu0 %214, %v212
        %v216 = vpop.permute.xlu0 %215
        %v219 = vperm.slane %v210, 0
        %v220 = vperm.slane %v210, 4
        %v223 = vperm.slane %v219, 0
        %v224 = vperm.slane %v220, 0
        %v225 = vmul.f32 %v216, %v223
        %v226 = vmul.f32 %v216, %v224
        %227 = vset.pattern.permute.xlu0 1
        %228 = vperm.xlu0 %227, %v212
        %v229 = vpop.permute.xlu0 %228
        %v231 = vperm.slane %v210, 1
        %v232 = vperm.slane %v210, 5
        %v235 = vperm.slane %v231, 1
        %v236 = vperm.slane %v232, 1
        %v237 = vmul.f32 %v229, %v235
        %v238 = vmul.f32 %v229, %v236
        %v239 = vadd.f32 %v225, %v237
        %v240 = vadd.f32 %v226, %v238
        %241 = vset.pattern.permute.xlu0 2
        %242 = vperm.xlu0 %241, %v212
        %v243 = vpop.permute.xlu0 %242
        %v245 = vperm.slane %v210, 2
        %v246 = vperm.slane %v210, 6
        %v249 = vperm.slane %v245, 2
        %v250 = vperm.slane %v246, 2
        %v251 = vmul.f32 %v243, %v249
        %v252 = vmul.f32 %v243, %v250
        %v253 = vadd.f32 %v239, %v251
        %v254 = vadd.f32 %v240, %v252
        %255 = vset.pattern.permute.xlu0 3
        %256 = vperm.xlu0 %255, %v212
        %v257 = vpop.permute.xlu0 %256
        %v259 = vperm.slane %v210, 3
        %v260 = vperm.slane %v210, 7
        %v263 = vperm.slane %v259, 3
        %v264 = vperm.slane %v260, 3
        %v265 = vmul.f32 %v257, %v263
        %v266 = vmul.f32 %v257, %v264
        %v267 = vadd.f32 %v253, %v265
        %v268 = vadd.f32 %v254, %v266
        %270 = vset.pattern.permute.xlu0 0
        %271 = vperm.xlu0 %270, %v211
        %v272 = vpop.permute.xlu0 %271
        %v274 = vadd.f32 %v267, %v272
        %v275 = vadd.f32 %v268, %v272
        %v276 = vrsqrt.pop %v274
        %v277 = vmul.f32 %v276, %v274
        %v278 = vmul.f32 %v277, %v276
        %v279 = vmul.f32 0.5, %v278
        %v280 = vsub.f32 1.5, %v279
        %v281 = vmul.f32 %v276, %v280
        %vm282 = vweird.f32 %v274
        %vm283 = vweird.f32 %v276
        %vm284 = vmor %vm282, %vm283
        %v285 = vsel %vm284, %v276, %v281
        %v286 = vrsqrt.pop %v275
        %v287 = vmul.f32 %v286, %v275
        %v288 = vmul.f32 %v287, %v286
        %v289 = vmul.f32 0.5, %v288
        %v290 = vsub.f32 1.5, %v289
        %v291 = vmul.f32 %v286, %v290
        %vm292 = vweird.f32 %v275
        %vm293 = vweird.f32 %v286
        %vm294 = vmor %vm292, %vm293
        %v295 = vsel %vm294, %v286, %v291
        %v298 = vrot.slane %v295, 4
        %vm299 = vcmask 1043456
        %v300 = vsel %vm299, %v285, %v298
        %v302 = vmul.f32 %v209, %v300
        %303 = vst [vmem:[%s206] sm:$0xff] %v302
        %s304 = sand.u32 %s112, 1
        %s305 = scalar_lea.sflag [#allocation4], %s304
        %s306 = sand.u32 %s112, 1
        %s307 = smul.addr %s306, 8
        %s308 = scalar_lea.vmem [#allocation5], %s307
        // Predicated region
        $region37: #{tpu_custom_call.1} parent=31 // pred_check
          %p309 = pneg %p122
        $region38: #{tpu_custom_call.1} parent=31 // pred_check_branch
          %311 = sbr.rel (%p309) target = $region40
        $region39: #{tpu_custom_call.1} parent=31 // pred_region
          %s312 = smul.u32 2, %s25
          %314 = vsyncadd %s305, 0
          %s315 = smul.addr %s24, 2
          %s316 = sadd.s32 %s312, %s315
          %s317 = smul.addr %s316, 4
          %s318 = scalar_lea.hbm %s3, %s317
          %s320 = sshll.u32 %s308, 4
          %s321 = int_to_ptr.vmem [resolvable:$true] %s320
          %s322 = sshll.u32 %s318, 4
          %s323 = int_to_ptr.hbm [resolvable:$true] %s322
          %325 = dma.vmem_to_hbm [thread:$0]  %s321, 128, %s323, %s305
        $region40: #{tpu_custom_call.1} parent=31 // pred_fallthru
          _
      $region32: #{tpu_custom_call.1} parent=5 // pred_fallthru
        _
      %p326 = scmp.le.s32.totalorder 2, %s15
      // Predicated region
      $region41: #{tpu_custom_call.1} parent=5 // pred_check
        %p327 = pneg %p326
      $region42: #{tpu_custom_call.1} parent=5 // pred_check_branch
        %329 = sbr.rel (%p327) target = $region44
      $region43: #{tpu_custom_call.1} parent=5 // pred_region
        %s330 = ssub.s32 %s15, 2
        // Predicated region
        $region45: #{tpu_custom_call.1} parent=43 // pred_check
          %p331 = pneg %p128
        $region46: #{tpu_custom_call.1} parent=43 // pred_check_branch
          %333 = sbr.rel (%p331) target = $region48
        $region47: #{tpu_custom_call.1} parent=43 // pred_region
          %s334 = sand.u32 %s113, 1
          %s335 = scalar_lea.sflag [#allocation4], %s334
          %s336 = sand.u32 %s113, 1
          %s337 = smul.addr %s336, 8
          %s338 = scalar_lea.vmem [#allocation5], %s337
          %340 = dma.done %s335, 128
        $region48: #{tpu_custom_call.1} parent=43 // pred_fallthru
          _
      $region44: #{tpu_custom_call.1} parent=5 // pred_fallthru
        _
    $region6: #{tpu_custom_call.1} parent=1 // loop_footer
      %s19 = sadd.s32 1, %s15
    $region7: #{tpu_custom_call.1} parent=1 // loop_footer_branch
      %14 = sbr.rel target = $region3
    $region8: #{tpu_custom_call.1} parent=1 // loop_exit
      _
    %341 = vsyncpa [#allocation3], 1
    %s342 = scalar_lea.sflag [#allocation3], 1
    %343 = vsyncpa %s342, 1
    %344 = vsyncpa [#allocation4], 1
    %s345 = scalar_lea.sflag [#allocation4], 1
    %346 = vsyncpa %s345, 1

</llo_original>
